<compile_context>
chip_gen: v6e
topology: v6e:2x2x1
jax: 0.10.0
libtpu: 0.0.40
codegen_flags: <defaults>
</compile_context>

<pallas_src>
import functools

import jax
import jax.numpy as jnp
from jax.experimental import pallas as pl
from jax.experimental.pallas import tpu as pltpu


def mlp_kernel(x_ref, p_ref, b2_ref, o_ref):
    # x_ref : (F, N)        batch on the lane axis (lane-dense)
    # p_ref : (H, F+1+O)    packed [ w1 | b1 | w2^T ] parameter block
    # b2_ref: (O,)          SMEM (scalar path)
    # o_ref : (O, N)        lane-dense output slab
    n_feat = x_ref.shape[0]
    n_out = o_ref.shape[0]

    x = x_ref[...]                                  # (F, N)

    # Layer 1 on the VPU: z[h, n] = b1[h] + sum_f w1[h, f] * x[f, n]
    z = p_ref[:, n_feat:n_feat + 1]                 # b1 column, (H, 1) -> lane bcast
    for f in range(n_feat):                         # static unroll, F is tiny (=1)
        z = z + p_ref[:, f:f + 1] * x[f:f + 1, :]
    h_act = jnp.maximum(z, 0.0)                     # (H, N)

    # Layer 2: elementwise multiply + sublane (hidden-axis) reduce on the XLU,
    # written straight into the output rows (no concat / extra VMEM copies).
    for o in range(n_out):                          # static unroll, O is tiny (=1)
        w2_col = p_ref[:, n_feat + 1 + o:n_feat + 2 + o]      # (H, 1)
        row = jnp.sum(h_act * w2_col, axis=0, keepdims=True) + b2_ref[o]
        o_ref[o:o + 1, :] = row.astype(o_ref.dtype)


@functools.partial(jax.jit)
def net_forward(x, w1, b1, w2, b2):
    """x: (N, F); w1: (H, F) PyTorch layout; b1: (H,); w2: (O, H); b2: (O,)."""
    n, f = x.shape
    h = w1.shape[0]
    o = w2.shape[0]

    x_lanes = x.T                                   # (F, N), batch on lanes
    # Pack all small parameter arrays into a single VMEM block: [w1 | b1 | w2^T]
    params = jnp.concatenate(
        [w1, b1.reshape(h, 1), w2.T], axis=1).astype(jnp.float32)  # (H, F+1+O)

    vmem = pl.BlockSpec(memory_space=pltpu.MemorySpace.VMEM)
    smem = pl.BlockSpec(memory_space=pltpu.MemorySpace.SMEM)

    out_t = pl.pallas_call(
        mlp_kernel,
        out_shape=jax.ShapeDtypeStruct((o, n), x.dtype),
        in_specs=[vmem, vmem, smem],
        out_specs=vmem,
    )(x_lanes, params, b2)

    # Back to PyTorch's (N, n_output) layout.
    return out_t.T


def init_params(key, n_feature, n_hidden, n_output):
    # Deterministic init mimicking torch.nn.Linear: U(-1/sqrt(in), 1/sqrt(in))
    k1, k2, k3, k4 = jax.random.split(key, 4)
    lim1 = 1.0 / jnp.sqrt(jnp.float32(n_feature))
    lim2 = 1.0 / jnp.sqrt(jnp.float32(n_hidden))
    w1 = jax.random.uniform(k1, (n_hidden, n_feature), jnp.float32, -lim1, lim1)
    b1 = jax.random.uniform(k2, (n_hidden,), jnp.float32, -lim1, lim1)
    w2 = jax.random.uniform(k3, (n_output, n_hidden), jnp.float32, -lim2, lim2)
    b2 = jax.random.uniform(k4, (n_output,), jnp.float32, -lim2, lim2)
    return w1, b1, w2, b2


if __name__ == "__main__":
    n_feature, n_hidden, n_output = 1, 32, 1
    N = 100  # matches x = torch.unsqueeze(torch.linspace(-1, 1, 100), dim=1)

    key = jax.random.PRNGKey(0)
    w1, b1, w2, b2 = init_params(key, n_feature, n_hidden, n_output)

    x = jnp.linspace(-1.0, 1.0, N, dtype=jnp.float32).reshape(N, 1)

    out = net_forward(x, w1, b1, w2, b2)
    jax.block_until_ready(out)

    # Reference check in plain JAX
    ref = jnp.maximum(x @ w1.T + b1, 0.0) @ w2.T + b2
    assert out.shape == (N, n_output)
    assert jnp.allclose(out, ref, atol=1e-5, rtol=1e-5)

    print("KERNEL_OK")
</pallas_src>

<mosaic_0001>
module attributes {stable_mosaic.version = 11 : i64} {
  func.func @mlp_kernel(%arg0: memref<1x100xf32, #tpu.memory_space<vmem>>, %arg1: memref<32x3xf32, #tpu.memory_space<vmem>>, %arg2: memref<1xf32, #tpu.memory_space<smem>>, %arg3: memref<1x100xf32, #tpu.memory_space<vmem>>) attributes {dimension_semantics = [], scalar_prefetch = 0 : i64, scratch_operands = 0 : i64, tpu.core_type = #tpu.core_type<tc>} {
    %c0 = arith.constant 0 : index
    %c0_0 = arith.constant 0 : index
    %0 = vector.load %arg0[%c0, %c0_0] : memref<1x100xf32, #tpu.memory_space<vmem>>, vector<1x100xf32>
    %c0_1 = arith.constant 0 : index
    %c1 = arith.constant 1 : index
    %1 = vector.load %arg1[%c0_1, %c1] : memref<32x3xf32, #tpu.memory_space<vmem>>, vector<32x1xf32>
    %c0_2 = arith.constant 0 : index
    %c0_3 = arith.constant 0 : index
    %2 = vector.load %arg1[%c0_2, %c0_3] : memref<32x3xf32, #tpu.memory_space<vmem>>, vector<32x1xf32>
    %3 = vector.broadcast %2 : vector<32x1xf32> to vector<32x100xf32>
    %4 = vector.broadcast %0 : vector<1x100xf32> to vector<32x100xf32>
    %5 = arith.mulf %3, %4 : vector<32x100xf32>
    %6 = vector.broadcast %1 : vector<32x1xf32> to vector<32x100xf32>
    %7 = arith.addf %6, %5 : vector<32x100xf32>
    %cst = arith.constant 0.000000e+00 : f32
    %8 = vector.broadcast %cst : f32 to vector<32x100xf32>
    %9 = arith.maximumf %7, %8 : vector<32x100xf32>
    %c0_4 = arith.constant 0 : index
    %c2 = arith.constant 2 : index
    %10 = vector.load %arg1[%c0_4, %c2] : memref<32x3xf32, #tpu.memory_space<vmem>>, vector<32x1xf32>
    %11 = vector.broadcast %10 : vector<32x1xf32> to vector<32x100xf32>
    %12 = arith.mulf %9, %11 : vector<32x100xf32>
    %cst_5 = arith.constant dense<0.000000e+00> : vector<100xf32>
    %13 = vector.multi_reduction <add>, %12, %cst_5 [0] : vector<32x100xf32> to vector<100xf32>
    %14 = vector.shape_cast %13 : vector<100xf32> to vector<1x100xf32>
    %c0_6 = arith.constant 0 : index
    %15 = memref.load %arg2[%c0_6] : memref<1xf32, #tpu.memory_space<smem>>
    %16 = vector.broadcast %15 : f32 to vector<1x100xf32>
    %17 = arith.addf %14, %16 : vector<1x100xf32>
    %c0_7 = arith.constant 0 : index
    %c0_8 = arith.constant 0 : index
    %18 = vector.load %arg3[%c0_7, %c0_8] : memref<1x100xf32, #tpu.memory_space<vmem>>, vector<1x100xf32>
    tpu.vector_store %arg3[%c0_7, %c0_8], %17 {strides = array<i32>} : memref<1x100xf32, #tpu.memory_space<vmem>>, vector<1x100xf32>,
    return
  }
}

</mosaic_0001>

<llo_original>
// kernel: net_forward.1
$region0: #{net_forward.1}
  #allocation0 [shape = 'u32[]', space=smem, size = 0x4, offset = 0x4, fixed_abs, tag = 'smem constant byte address 0x4 - core index']
  #allocation1 [shape = 'u32[144,128]{1,0:T(1,128)}', space=vmem, size = 0x12000, scoped, tag = 'internal scratch']
  #allocation2 [shape = 'f32[1]{0:T(128)S(6)}', space=smem, size = 0x200, scoped, tag = 'scoped memory for net_forward.1']
  %s0 = inlined_call_operand.vmem [shape: f32[1,100], index: 0, kind: input, shape index: {}]
  %s1 = inlined_call_operand.vmem [shape: f32[32,3], index: 1, kind: input, shape index: {}]
  %s2 = inlined_call_operand.<no memory space> [shape: f32[1], index: 2, kind: input, shape index: {}]
  %s3 = inlined_call_operand.hbm [shape: f32[1,100], index: 3, kind: output, shape index: {}]
  %s4 = sld [smem:[#allocation0]]
  $region22: #{net_forward.1} parent=0
    _
  %s6 = ssub.s32 1, %s4
  %s7 = scalar_select 0, %s6, %s4
  %8 = sst [smem:[#allocation2]] %s2
  $region1: #{net_forward.1} parent=0
    #allocation3 [shape = 'u8[512]{0}', space=vmem, size = 0x400, scoped, tag = 'output window, operand 0, single buffered']
    #allocation4 [shape = 's32[1]{0}', space=sflag, size = 0x4, scoped, tag = 'scoped memory for net_forward.1']
    %9 = vsyncpa [#allocation4], 0
    // Predicated region
    $region2: #{net_forward.1} parent=1 // pred_check
      _
    $region3: #{net_forward.1} parent=1 // pred_check_branch
      %11 = sbr.rel (0) target = $region5
    $region4: #{net_forward.1} parent=1 // pred_region
      _
    $region5: #{net_forward.1} parent=1 // pred_fallthru
      _
    // Predicated region
    $region6: #{net_forward.1} parent=1 // pred_check
      _
    $region7: #{net_forward.1} parent=1 // pred_check_branch
      %13 = sbr.rel (0) target = $region9
    $region8: #{net_forward.1} parent=1 // pred_region
      _
    $region9: #{net_forward.1} parent=1 // pred_fallthru
      _
    // Predicated region
    $region10: #{net_forward.1} parent=1 // pred_check
      _
    $region11: #{net_forward.1} parent=1 // pred_check_branch
      %15 = sbr.rel (0) target = $region13
    $region12: #{net_forward.1} parent=1 // pred_region
      _
    $region13: #{net_forward.1} parent=1 // pred_fallthru
      _
    %v16 = vld [vmem:[%s0] sm:$0x1]
    %v17 = vld [vmem:[%s1] sm:$0xff]
    %v18 = vld [vmem:[%s1 + $0x8] sm:$0xff]
    %v19 = vld [vmem:[%s1 + $0x10] sm:$0xff]
    %v20 = vld [vmem:[%s1 + $0x18] sm:$0xff]
    %22 = vset.pattern.permute.xlu0 0
    %23 = vperm.xlu0 %22, %v17
    %v24 = vpop.permute.xlu0 %23
    %27 = vset.pattern.permute.xlu0 0
    %28 = vperm.xlu0 %27, %v18
    %v29 = vpop.permute.xlu0 %28
    %32 = vset.pattern.permute.xlu0 0
    %33 = vperm.xlu0 %32, %v19
    %v34 = vpop.permute.xlu0 %33
    %37 = vset.pattern.permute.xlu0 0
    %38 = vperm.xlu0 %37, %v20
    %v39 = vpop.permute.xlu0 %38
    %v42 = vlaneseq
    %v43 = vshrl.u32 %v42, 7
    %v44 = vsub.s32 0, %v43
    %v45 = vrot.slane %v16, %v44
    %v47 = vmul.f32 %v24, %v45
    %v48 = vmul.f32 %v29, %v45
    %v49 = vmul.f32 %v34, %v45
    %v50 = vmul.f32 %v39, %v45
    %51 = vset.pattern.permute.xlu0 1
    %52 = vperm.xlu0 %51, %v17
    %v53 = vpop.permute.xlu0 %52
    %55 = vset.pattern.permute.xlu0 1
    %56 = vperm.xlu0 %55, %v18
    %v57 = vpop.permute.xlu0 %56
    %59 = vset.pattern.permute.xlu0 1
    %60 = vperm.xlu0 %59, %v19
    %v61 = vpop.permute.xlu0 %60
    %63 = vset.pattern.permute.xlu0 1
    %64 = vperm.xlu0 %63, %v20
    %v65 = vpop.permute.xlu0 %64
    %v67 = vadd.f32 %v53, %v47
    %v68 = vadd.f32 %v57, %v48
    %v69 = vadd.f32 %v61, %v49
    %v70 = vadd.f32 %v65, %v50
    %v71 = vmax.f32 %v67, 0.0
    %v72 = vmax.f32 %v68, 0.0
    %v73 = vmax.f32 %v69, 0.0
    %v74 = vmax.f32 %v70, 0.0
    %75 = vset.pattern.permute.xlu0 2
    %76 = vperm.xlu0 %75, %v17
    %v77 = vpop.permute.xlu0 %76
    %79 = vset.pattern.permute.xlu0 2
    %80 = vperm.xlu0 %79, %v18
    %v81 = vpop.permute.xlu0 %80
    %83 = vset.pattern.permute.xlu0 2
    %84 = vperm.xlu0 %83, %v19
    %v85 = vpop.permute.xlu0 %84
    %87 = vset.pattern.permute.xlu0 2
    %88 = vperm.xlu0 %87, %v20
    %v89 = vpop.permute.xlu0 %88
    %v91 = vmul.f32 %v71, %v77
    %v92 = vmul.f32 %v72, %v81
    %v93 = vmul.f32 %v73, %v85
    %v94 = vmul.f32 %v74, %v89
    %vm95 = vcmask 818176
    %v96 = vsel %vm95, %v91, 0.0
    %v97 = vsel %vm95, %v92, 0.0
    %v98 = vadd.f32 %v96, %v97
    %v99 = vsel %vm95, %v93, 0.0
    %v100 = vadd.f32 %v98, %v99
    %v101 = vsel %vm95, %v94, 0.0
    %v102 = vadd.f32 %v100, %v101
    %v103 = vrot.slane %v102, 4
    %v104 = vadd.f32 %v102, %v103
    %v105 = vrot.slane %v104, 2
    %v106 = vadd.f32 %v104, %v105
    %v107 = vrot.slane %v106, 1
    %v108 = vadd.f32 %v106, %v107
    %s109 = sld [smem:[#allocation2]]
    %v110 = vstv %s109
    %v111 = vadd.f32 %v108, %v110
    %vm112 = vcmask 811008
    %113 = vst.msk [vmem:[#allocation3] sm:$0x1] %vm112, %v111
    // Predicated region
    $region14: #{net_forward.1} parent=1 // pred_check
      _
    $region15: #{net_forward.1} parent=1 // pred_check_branch
      %115 = sbr.rel (0) target = $region17
    $region16: #{net_forward.1} parent=1 // pred_region
      %s117 = ssub.s32 16, 16
      %118 = vsyncadd [#allocation4], %s117
      %s120 = sshll.u32 [#allocation3], 4
      %s121 = int_to_ptr.vmem [resolvable:$true] %s120
      %123 = dma.vmem_to_hbm [thread:$0]  %s121, 16, %s3, [#allocation4]
    $region17: #{net_forward.1} parent=1 // pred_fallthru
      _
    // Predicated region
    $region18: #{net_forward.1} parent=1 // pred_check
      _
    $region19: #{net_forward.1} parent=1 // pred_check_branch
      %125 = sbr.rel (0) target = $region21
    $region20: #{net_forward.1} parent=1 // pred_region
      %126 = dma.done [#allocation4], 16
    $region21: #{net_forward.1} parent=1 // pred_fallthru
      _
    %127 = vsyncpa [#allocation4], 1

</llo_original>
